<compile_context>
chip_gen: v5e
topology: v5e:2x2
jax: 0.10.0
libtpu: 0.0.40
codegen_flags: <defaults>
</compile_context>

<pallas_src>
import functools
import math

import jax
import jax.numpy as jnp
from jax import lax
from jax.experimental import pallas as pl
from jax.experimental.pallas import tpu as pltpu


# --------------------------------------------------------------------------
# Generation-aware tile / VMEM configuration
# --------------------------------------------------------------------------
_GEN_CFG = {
    # target tile sizes (clamped to the real dims) + explicit scoped-VMEM cap.
    "v5e":   dict(tm=256, tn=512,  tk=1024, vmem=64 << 20),   # 128 MiB physical
    "v6e":   dict(tm=512, tn=1024, tk=1024, vmem=64 << 20),   # 128 MiB physical
    "v7x":   dict(tm=512, tn=512,  tk=1024, vmem=48 << 20),   # 64 MiB per TC
    "other": dict(tm=256, tn=512,  tk=1024, vmem=32 << 20),
}


def _tpu_generation():
    try:
        kind = jax.devices()[0].device_kind.lower()
    except Exception:
        return "other"
    if "v5 lite" in kind or "v5e" in kind or "v5lite" in kind:
        return "v5e"
    if "v6" in kind:
        return "v6e"
    if "v7" in kind:
        return "v7x"
    return "other"


# --------------------------------------------------------------------------
# Kernels
# --------------------------------------------------------------------------
def _proj_kernel_single(x_ref, wt_ref, o_ref):
    """Whole problem in one VMEM block: o = x @ wt (wt already (K, N))."""
    x = x_ref[...]
    w = wt_ref[...]
    if x.dtype != w.dtype:            # static (trace-time) decision
        x = x.astype(w.dtype)
    o_ref[...] = jnp.dot(x, w, preferred_element_type=jnp.float32).astype(o_ref.dtype)


def _proj_kernel_tiled(x_ref, wt_ref, o_ref, acc_ref, *, compute_dtype):
    """One (tm, tn) output tile, accumulating (f32) over the K grid axis."""
    @pl.when(pl.program_id(2) == 0)
    def _():
        acc_ref[...] = jnp.zeros_like(acc_ref)

    x = x_ref[...]
    w = wt_ref[...]
    if x.dtype != compute_dtype:      # bf16-feed the MXU, f32 accumulate
        x = x.astype(compute_dtype)
    if w.dtype != compute_dtype:
        w = w.astype(compute_dtype)
    acc_ref[...] += jnp.dot(x, w, preferred_element_type=jnp.float32)

    @pl.when(pl.program_id(2) == pl.num_programs(2) - 1)
    def _():
        o_ref[...] = acc_ref[...].astype(o_ref.dtype)


# --------------------------------------------------------------------------
# Host-side helpers
# --------------------------------------------------------------------------
def _pick_tile(dim, target, align):
    """Full dim when it fits (always legal); otherwise the largest `align`-
    aligned tile <= target that divides dim (no padding); otherwise the
    largest aligned tile <= target (padding fallback)."""
    if dim <= target:
        return dim
    t = (target // align) * align
    fallback = max(align, t)
    while t >= align:
        if dim % t == 0:
            return t
        t -= align
    return fallback


def _pad_to(a, target, axis):
    pad = target - a.shape[axis]
    if pad == 0:
        return a  # no-op: no extra HBM pass in the aligned case
    widths = [(0, 0)] * a.ndim
    widths[axis] = (0, pad)
    return jnp.pad(a, widths)


def prepare_weight(weight, dtype=jnp.bfloat16):
    """One-time (per model init) prep of the torch.nn.Linear weight.

    Native (D_OUT, D_IN) -> canonical (D_IN, D_OUT) so the kernel runs the
    canonical (M,K)x(K,N) contraction; optionally stored in bf16 so the HBM
    weight stream (and MXU feed) is half-width.  Amortized over every forward.
    """
    return jnp.asarray(weight).T.astype(dtype)


# --------------------------------------------------------------------------
# Forward: projection = x @ W.T
# --------------------------------------------------------------------------
@functools.partial(jax.jit, static_argnames=("tm", "tn", "tk", "mxu_bf16"))
def linear_projection(x, wt, *, tm=None, tn=None, tk=None, mxu_bf16=True):
    """Pallas implementation of TorchLinearModel.forward.

    Args:
        x:  (B, D_IN) float32.
        wt: (D_IN, D_OUT) weight from prepare_weight() (f32 or bf16).
    Returns:
        (B, D_OUT) in x.dtype.
    """
    B, D_IN = x.shape
    D_IN_w, D_OUT = wt.shape
    assert D_IN_w == D_IN

    gen = _tpu_generation()
    cfg = _GEN_CFG[gen]
    tm = cfg["tm"] if tm is None else tm
    tn = cfg["tn"] if tn is None else tn
    tk = cfg["tk"] if tk is None else tk

    use_bf16 = mxu_bf16 or wt.dtype == jnp.bfloat16
    compute_dtype = jnp.bfloat16 if use_bf16 else x.dtype
    out_dtype = x.dtype
    flops = 2 * B * D_IN * D_OUT

    one_pass_bytes = (x.size * x.dtype.itemsize
                      + wt.size * wt.dtype.itemsize
                      + B * D_OUT * x.dtype.itemsize)

    # ---- Small-problem fast path: one grid step, full-array blocks. --------
    if one_pass_bytes <= (4 << 20):
        # NOTE: for the module's shipped 8x32x16 shape a plain jnp.dot would
        # be as fast (dispatch-dominated, masked stores for the 16-wide lane
        # dim); the Pallas path is kept so the kernel itself is exercised.
        return pl.pallas_call(
            _proj_kernel_single,
            out_shape=jax.ShapeDtypeStruct((B, D_OUT), out_dtype),
            grid_spec=pltpu.PrefetchScalarGridSpec(
                num_scalar_prefetch=0,
                grid=(1,),
                in_specs=[
                    pl.BlockSpec((B, D_IN), lambda i: (0, 0)),
                    pl.BlockSpec((D_IN, D_OUT), lambda i: (0, 0)),
                ],
                out_specs=pl.BlockSpec((B, D_OUT), lambda i: (0, 0)),
            ),
            compiler_params=pltpu.CompilerParams(vmem_limit_bytes=cfg["vmem"]),
            cost_estimate=pl.CostEstimate(
                flops=flops, transcendentals=0, bytes_accessed=one_pass_bytes),
        )(x, wt)

    # ---- Tiled MXU path. ----------------------------------------------------
    m_align = 16 if use_bf16 else 8            # bf16 packed sublane tile
    tm_ = _pick_tile(B, tm, m_align)
    tn_ = _pick_tile(D_OUT, tn, 128)
    tk_ = _pick_tile(D_IN, tk, 128)

    Mp = pl.cdiv(B, tm_) * tm_
    Np = pl.cdiv(D_OUT, tn_) * tn_
    Kp = pl.cdiv(D_IN, tk_) * tk_

    # v7x has 2 TensorCores: make sure at least one "parallel" axis has >= 2
    # tiles so both cores get work (halving keeps divisibility of Mp/Np).
    if gen == "v7x" and Mp // tm_ == 1 and Np // tn_ == 1:
        if tn_ % 256 == 0:
            tn_ //= 2
        elif tm_ % (2 * m_align) == 0:
            tm_ //= 2
        # else: genuinely single-tile problem; runs on one core.
        # TODO(synk): explicit pl.core_map split for tiny-but-not-small shapes.

    # Padding (and the trailing slice) only materialize for ragged dims where
    # no aligned divisor tile exists.
    # TODO(synk): handle ragged tails in-kernel (pl.when + pl.ds) to avoid the
    # extra HBM pass on misaligned shapes.
    xp = _pad_to(_pad_to(x, Mp, 0), Kp, 1)
    wtp = _pad_to(_pad_to(wt, Kp, 0), Np, 1)

    mt, nt, kt = Mp // tm_, Np // tn_, Kp // tk_
    # Honest streaming estimate: x is re-read per N-tile, W per M-tile.
    bytes_accessed = (nt * x.size * x.dtype.itemsize
                      + mt * wt.size * wt.dtype.itemsize
                      + B * D_OUT * x.dtype.itemsize)

    out = pl.pallas_call(
        functools.partial(_proj_kernel_tiled, compute_dtype=compute_dtype),
        out_shape=jax.ShapeDtypeStruct((Mp, Np), out_dtype),
        grid_spec=pltpu.PrefetchScalarGridSpec(
            num_scalar_prefetch=0,
            grid=(mt, nt, kt),
            in_specs=[
                pl.BlockSpec((tm_, tk_), lambda i, j, k: (i, k)),
                pl.BlockSpec((tk_, tn_), lambda i, j, k: (k, j)),
            ],
            out_specs=pl.BlockSpec((tm_, tn_), lambda i, j, k: (i, j)),
            scratch_shapes=[pltpu.VMEM((tm_, tn_), jnp.float32)],
        ),
        compiler_params=pltpu.CompilerParams(
            dimension_semantics=("parallel", "parallel", "arbitrary"),
            vmem_limit_bytes=cfg["vmem"],
        ),
        cost_estimate=pl.CostEstimate(
            flops=flops, transcendentals=0, bytes_accessed=bytes_accessed),
    )(xp, wtp)

    if (Mp, Np) != (B, D_OUT):
        out = out[:B, :D_OUT]
    return out


# --------------------------------------------------------------------------
# Convenience mirroring TorchLinearModel.forward (native weight layout).
# --------------------------------------------------------------------------
def torch_linear_model_forward(x, weight, weight_dtype=jnp.bfloat16):
    """weight in native torch (D_OUT, D_IN) layout; prefer prepare_weight()
    once at model init + linear_projection() per call."""
    return linear_projection(x, prepare_weight(weight, dtype=weight_dtype))


if __name__ == "__main__":
    key = jax.random.PRNGKey(0)
    kx, kw, kx2, kw2 = jax.random.split(key, 4)

    # Shapes consistent with the module: batch=8, in_features=32, out_features=16.
    B, D_IN, D_OUT = 8, 32, 16
    x = jax.random.normal(kx, (B, D_IN), dtype=jnp.float32)
    bound = 1.0 / math.sqrt(D_IN)  # torch.nn.Linear default uniform bound
    weight = jax.random.uniform(
        kw, (D_OUT, D_IN), dtype=jnp.float32, minval=-bound, maxval=bound
    )

    # One-time "model init": canonical (D_IN, D_OUT) layout.  Keep the tiny
    # PCA projection in f32 so it matches the torch reference to 1e-5.
    wt = prepare_weight(weight, dtype=jnp.float32)
    out = linear_projection(x, wt, mxu_bf16=False)
    jax.block_until_ready(out)
    ref = jnp.dot(x, weight.T, precision=lax.Precision.HIGHEST)
    assert out.shape == (B, D_OUT)
    assert jnp.allclose(out, ref, atol=1e-5, rtol=1e-5)

    # Secondary check: tiled MXU path with bf16 weight storage + bf16-fed MXU
    # (f32 accumulation) at a realistic linear-layer size.
    B2, K2, N2 = 512, 2048, 1024
    x2 = jax.random.normal(kx2, (B2, K2), dtype=jnp.float32)
    w2 = jax.random.normal(kw2, (N2, K2), dtype=jnp.float32) / math.sqrt(K2)
    wt2 = prepare_weight(w2, dtype=jnp.bfloat16)
    out2 = linear_projection(x2, wt2)
    jax.block_until_ready(out2)
    ref2 = jnp.dot(x2, w2.T, precision=lax.Precision.HIGHEST)
    rel_err = jnp.max(jnp.abs(out2 - ref2)) / (jnp.max(jnp.abs(ref2)) + 1e-12)
    assert out2.shape == (B2, N2)
    assert float(rel_err) < 2e-2, float(rel_err)  # bf16 feed, f32 accumulate

    print("KERNEL_OK")
</pallas_src>

<mosaic_0001>
module attributes {stable_mosaic.version = 11 : i64} {
  func.func @_proj_kernel_single(%arg0: i32, %arg1: memref<8x32xf32, #tpu.memory_space<vmem>>, %arg2: memref<32x16xf32, #tpu.memory_space<vmem>>, %arg3: memref<8x16xf32, #tpu.memory_space<vmem>>) attributes {dimension_semantics = [#tpu.dimension_semantics<arbitrary>], iteration_bounds = array<i64: 1>, scalar_prefetch = 0 : i64, scratch_operands = 0 : i64, tpu.core_type = #tpu.core_type<tc>, window_params = [{pipeline_mode = #tpu.pipeline_mode<synchronous>, transform_indices = @transform_0, window_bounds = array<i64: 8, 32>}, {pipeline_mode = #tpu.pipeline_mode<synchronous>, transform_indices = @transform_1, window_bounds = array<i64: 32, 16>}, {pipeline_mode = #tpu.pipeline_mode<synchronous>, transform_indices = @transform_2, window_bounds = array<i64: 8, 16>}]} {
    %c0 = arith.constant 0 : index
    %c0_0 = arith.constant 0 : index
    %0 = vector.load %arg1[%c0, %c0_0] : memref<8x32xf32, #tpu.memory_space<vmem>>, vector<8x32xf32>
    %c0_1 = arith.constant 0 : index
    %c0_2 = arith.constant 0 : index
    %1 = vector.load %arg2[%c0_1, %c0_2] : memref<32x16xf32, #tpu.memory_space<vmem>>, vector<32x16xf32>
    %cst = arith.constant dense<0.000000e+00> : vector<8x16xf32>
    %2 = tpu.matmul %0, %1, %cst {dimension_numbers = #tpu.dot_dimension_numbers<[1], [0], [0], [1], [0, 0, 1, 1], [], []>} : vector<8x32xf32>, vector<32x16xf32>, vector<8x16xf32> -> vector<8x16xf32>
    %c0_3 = arith.constant 0 : index
    %c0_4 = arith.constant 0 : index
    %3 = vector.load %arg3[%c0_3, %c0_4] : memref<8x16xf32, #tpu.memory_space<vmem>>, vector<8x16xf32>
    tpu.vector_store %arg3[%c0_3, %c0_4], %2 {strides = array<i32>} : memref<8x16xf32, #tpu.memory_space<vmem>>, vector<8x16xf32>,
    return
  }
  func.func @transform_0(%arg0: i32) -> (i32, i32) {
    %c0_i32 = arith.constant 0 : i32
    %c0_i32_0 = arith.constant 0 : i32
    %c0_i32_1 = arith.constant 0 : i32
    return %c0_i32, %c0_i32_0 : i32, i32
  }
  func.func @transform_1(%arg0: i32) -> (i32, i32) {
    %c0_i32 = arith.constant 0 : i32
    %c0_i32_0 = arith.constant 0 : i32
    %c0_i32_1 = arith.constant 0 : i32
    return %c0_i32, %c0_i32_0 : i32, i32
  }
  func.func @transform_2(%arg0: i32) -> (i32, i32) {
    %c0_i32 = arith.constant 0 : i32
    %c0_i32_0 = arith.constant 0 : i32
    %c0_i32_1 = arith.constant 0 : i32
    return %c0_i32, %c0_i32_0 : i32, i32
  }
}

</mosaic_0001>

<llo_original>
// kernel: linear_projection.1
$region0: #{linear_projection.1}
  #allocation0 [shape = 'u32[]', space=smem, size = 0x4, offset = 0x4, fixed_abs, tag = 'smem constant byte address 0x4 - core index']
  #allocation1 [shape = 'u32[72,128]{1,0:T(1,128)}', space=vmem, size = 0x9000, scoped, tag = 'internal scratch']
  %s0 = inlined_call_operand.vmem [shape: f32[8,32], index: 0, kind: input, shape index: {}]
  %s1 = inlined_call_operand.vmem [shape: f32[32,16], index: 1, kind: input, shape index: {}]
  %s2 = inlined_call_operand.hbm [shape: f32[8,16], index: 2, kind: output, shape index: {}]
  %s3 = sld [smem:[#allocation0]]
  $region18: #{linear_projection.1} parent=0
    _
  %s5 = ssub.s32 1, %s3
  %s6 = scalar_select 0, %s5, %s3
  $region1: #{linear_projection.1} parent=0
    #allocation2 [shape = 'u8[4096]{0}', space=vmem, size = 0x1000, scoped, tag = 'output window, operand 0, single buffered']
    #allocation3 [shape = 's32[1]{0}', space=sflag, size = 0x4, scoped, tag = 'scoped memory for linear_projection.1']
    %7 = vsyncpa [#allocation3], 0
    // Predicated region
    $region2: #{linear_projection.1} parent=1 // pred_check
      _
    $region3: #{linear_projection.1} parent=1 // pred_check_branch
      %9 = sbr.rel (0) target = $region5
    $region4: #{linear_projection.1} parent=1 // pred_region
      _
    $region5: #{linear_projection.1} parent=1 // pred_fallthru
      _
    // Predicated region
    $region6: #{linear_projection.1} parent=1 // pred_check
      _
    $region7: #{linear_projection.1} parent=1 // pred_check_branch
      %11 = sbr.rel (0) target = $region9
    $region8: #{linear_projection.1} parent=1 // pred_region
      _
    $region9: #{linear_projection.1} parent=1 // pred_fallthru
      _
    %v12 = vld [vmem:[%s0] sm:$0xff]
    %v13 = vld [vmem:[%s1] sm:$0xff]
    %v14 = vld [vmem:[%s1 + $0x8] sm:$0xff]
    %v15 = vld [vmem:[%s1 + $0x10] sm:$0xff]
    %v16 = vld [vmem:[%s1 + $0x18] sm:$0xff]
    %vm17 = vcmask 261120
    %v19 = vsel %vm17, %v12, 0
    %21 = vmatpush.msra.mxu0 0.0
    %22 = vmatpush.msra.mxu0 0.0
    %23 = vmatpush.msra.mxu0 0.0
    %24 = vmatpush.msra.mxu0 0.0
    %25 = vmatpush.msra.mxu0 0.0
    %26 = vmatpush.msra.mxu0 0.0
    %27 = vmatpush.msra.mxu0 0.0
    %28 = vmatpush.msra.mxu0 0.0
    %29 = vmatpush.msra.mxu0 0.0
    %30 = vmatpush.msra.mxu0 0.0
    %31 = vmatpush.msra.mxu0 0.0
    %32 = vmatpush.msra.mxu0 0.0
    %33 = vmatpush.msra.mxu0 %v16
    %34 = vmatpush.msra.mxu0 %v15
    %35 = vmatpush.msra.mxu0 %v14
    %36 = vmatpush.msra.mxu0 %v13
    %37 = vmatmul.f32.gmra.mxu0 %v19
    %v38 = vpop.f32.mrf.mxu0
    %v39 = vadd.f32 0.0, %v38
    %40 = vdwg.mxu0
    %vm41 = vcmask 130048
    %42 = vst.msk [vmem:[#allocation2] sm:$0xff] %vm41, %v39
    // Predicated region
    $region10: #{linear_projection.1} parent=1 // pred_check
      _
    $region11: #{linear_projection.1} parent=1 // pred_check_branch
      %44 = sbr.rel (0) target = $region13
    $region12: #{linear_projection.1} parent=1 // pred_region
      %46 = vsyncadd [#allocation3], 0
      %s48 = sshll.u32 [#allocation2], 4
      %s49 = int_to_ptr.vmem [resolvable:$true] %s48
      %s50 = sshll.u32 %s2, 4
      %s51 = int_to_ptr.hbm [resolvable:$true] %s50
      %53 = dma.vmem_to_hbm [thread:$0]  %s49, 128, %s51, [#allocation3]
    $region13: #{linear_projection.1} parent=1 // pred_fallthru
      _
    // Predicated region
    $region14: #{linear_projection.1} parent=1 // pred_check
      _
    $region15: #{linear_projection.1} parent=1 // pred_check_branch
      %55 = sbr.rel (0) target = $region17
    $region16: #{linear_projection.1} parent=1 // pred_region
      %57 = dma.done [#allocation3], 128
    $region17: #{linear_projection.1} parent=1 // pred_fallthru
      _
    %58 = vsyncpa [#allocation3], 1

</llo_original>
